<compile_context>
chip_gen: v6e
topology: v6e:2x2x1
jax: 0.10.0
libtpu: 0.0.40
codegen_flags: <defaults>
</compile_context>

<pallas_src>
import functools

import jax
import jax.numpy as jnp
from jax.experimental import pallas as pl
from jax.experimental.pallas import tpu as pltpu

_LANE = 128
_SUBLANE_PAIR = 16  # bf16 packs rows in pairs; keep batch tiles 16-aligned.


def _round_up(x: int, m: int) -> int:
    return ((x + m - 1) // m) * m


# ---------------------------------------------------------------------------
# Kernel
# ---------------------------------------------------------------------------
def _resblock_kernel(*refs, num_layers: int, compute_dtype):
    """Fused ResBlock on one batch tile.

    refs = (x_ref, w_0, b_0, ..., w_{L-1}, b_{L-1}, o_ref)
      x_ref : (tm, D0)        input dtype
      w_i   : (K_i, N_i)      compute_dtype (inner dims zero-padded to 128)
      b_i   : (1, N_i)        float32       (zero-padded)
      o_ref : (tm, D0)
    The first K and last N equal the true feature dim D0, so activations never
    need padding or slicing; zero-padded inner lanes stay exactly 0.
    """
    x_ref = refs[0]
    o_ref = refs[-1]
    wb = refs[1:-1]

    x = x_ref[...].astype(jnp.float32)
    h = x
    for i in range(num_layers):
        w = wb[2 * i][...]                                   # compute_dtype
        b = wb[2 * i + 1][...].astype(jnp.float32)
        acc = jnp.dot(h.astype(compute_dtype), w,
                      preferred_element_type=jnp.float32)    # MXU, f32 acc
        h = jnp.maximum(acc + b, 0.0)                        # bias+ReLU (VPU)
    o_ref[...] = (x + h).astype(o_ref.dtype)                 # residual add


# ---------------------------------------------------------------------------
# One-time parameter prep (hoisted out of the hot path)
# ---------------------------------------------------------------------------
def prepare_resblock_params(params, compute_dtype=jnp.bfloat16):
    """params: list of (w, b); w has shape (in, out) (already transposed from
    PyTorch's (out, in)), b has shape (out,). Returns a list of
    (w_padded[compute_dtype], b_padded[f32, shape (1, N)]).

    Inner feature dims are zero-padded to multiples of 128; the first K and
    last N keep the true dim so activations never need padding."""
    num_layers = len(params)
    assert num_layers >= 1, "num_layers must be >= 1"
    units = [params[0][0].shape[0]] + [w.shape[1] for (w, _) in params]
    assert units[0] == units[-1], "First and last units must be the same"

    padded = list(units)
    for i in range(1, num_layers):            # only inner dims get padded
        padded[i] = _round_up(units[i], _LANE)

    prepped = []
    for i, (w, b) in enumerate(params):
        k, n = w.shape
        kp, np_ = padded[i], padded[i + 1]
        wp = jnp.pad(w, ((0, kp - k), (0, np_ - n))).astype(compute_dtype)
        bp = jnp.pad(b.astype(jnp.float32).reshape(1, n),
                     ((0, 0), (0, np_ - n)))
        prepped.append((wp, bp))
    return prepped


# ---------------------------------------------------------------------------
# Forward
# ---------------------------------------------------------------------------
def _resblock_xla(x, prepared_params):
    """Plain-XLA path for tiny shapes (identical math to the kernel)."""
    x32 = x.astype(jnp.float32)
    h = x32
    for (w, b) in prepared_params:
        acc = jnp.dot(h.astype(w.dtype), w, preferred_element_type=jnp.float32)
        h = jnp.maximum(acc + b, 0.0)
    return (x32 + h).astype(x.dtype)


def resblock_forward(x, prepared_params, *, tile_m: int = 256,
                     force_pallas: bool = False):
    """ResBlock forward: x + relu(L_n(...relu(L_1(x))...)) as one fused kernel.

    `prepared_params` must come from `prepare_resblock_params` (padded + cast
    once, outside the hot path)."""
    M, D0 = x.shape
    num_layers = len(prepared_params)
    compute_dtype = prepared_params[0][0].dtype
    widths = [D0] + [w.shape[1] for (w, _) in prepared_params]
    assert prepared_params[0][0].shape[0] == D0
    assert widths[-1] == D0, "First and last units must be the same"

    # Tiny problems: padding 32->128 etc. wastes ~94% of the MXU and the call
    # is launch/grid-step dominated; XLA's fused dot path wins there.
    if not force_pallas and max(widths) < _LANE and M <= 256:
        return _resblock_xla(x, prepared_params)

    # Batch tile: 16-aligned, <= requested tile_m, clamped to the batch; split
    # big batches into >= 2 grid steps so v7x's 2 TensorCores both get work.
    tile_m_eff = min(_round_up(max(tile_m, _SUBLANE_PAIR), _SUBLANE_PAIR),
                     _round_up(M, _SUBLANE_PAIR))
    if M >= 2 * _LANE and pl.cdiv(M, tile_m_eff) < 2:
        tile_m_eff = _round_up(pl.cdiv(M, 2), _SUBLANE_PAIR)
    grid = (pl.cdiv(M, tile_m_eff),)

    wb_inputs = []
    for (w, b) in prepared_params:
        wb_inputs += [w, b]

    weight_bytes = sum(a.size * a.dtype.itemsize for a in wb_inputs)
    io_block_bytes = 2 * 2 * tile_m_eff * D0 * x.dtype.itemsize  # x+out, 2-buf
    act_bytes = 2 * tile_m_eff * max(widths) * 4                 # live h (f32)

    flops = sum(2 * M * w.shape[0] * w.shape[1] for (w, _) in prepared_params)
    cost = pl.CostEstimate(
        flops=flops, transcendentals=0,
        bytes_accessed=2 * M * D0 * x.dtype.itemsize + weight_bytes)

    def _build_and_run(single_buffer_weights: bool):
        def const_spec(shape):
            # Constant across the grid -> double-buffering buys nothing.
            if single_buffer_weights:
                return pl.BlockSpec(shape, lambda i: (0, 0),
                                    pipeline_mode=pl.Buffered(1))
            return pl.BlockSpec(shape, lambda i: (0, 0))

        wb_specs = [const_spec(a.shape) for a in wb_inputs]
        weight_buf = 1 if single_buffer_weights else 2
        vmem_needed = weight_bytes * weight_buf + io_block_bytes + act_bytes
        vmem_limit = int(vmem_needed * 1.3) + (4 << 20)          # +headroom
        vmem_limit = min(max(vmem_limit, 32 << 20), 100 << 20)

        return pl.pallas_call(
            functools.partial(_resblock_kernel, num_layers=num_layers,
                              compute_dtype=compute_dtype),
            out_shape=jax.ShapeDtypeStruct((M, D0), x.dtype),
            grid_spec=pltpu.PrefetchScalarGridSpec(
                num_scalar_prefetch=0,
                grid=grid,
                in_specs=[pl.BlockSpec((tile_m_eff, D0), lambda i: (i, 0))]
                         + wb_specs,
                out_specs=pl.BlockSpec((tile_m_eff, D0), lambda i: (i, 0)),
            ),
            compiler_params=pltpu.CompilerParams(
                dimension_semantics=("parallel",),
                vmem_limit_bytes=vmem_limit),
            cost_estimate=cost,
        )(x, *wb_inputs)

    try:
        return _build_and_run(True)
    except Exception:
        # pl.Buffered(1) unsupported on this jax/pipeline -> fall back to the
        # default double-buffered weight blocks (correct, just more VMEM).
        return _build_and_run(False)


# ---------------------------------------------------------------------------
# Reference / init helpers
# ---------------------------------------------------------------------------
def init_resblock_params(key, units, dtype=jnp.float32):
    """PyTorch nn.Linear default init: U(-1/sqrt(fan_in), +1/sqrt(fan_in)) for
    weight and bias. Weights returned as (in, out) for y = x @ W + b."""
    params = []
    for i in range(len(units) - 1):
        fan_in, fan_out = units[i], units[i + 1]
        key, kw, kb = jax.random.split(key, 3)
        bound = 1.0 / (fan_in ** 0.5)
        w_pt = jax.random.uniform(kw, (fan_out, fan_in), dtype=dtype,
                                  minval=-bound, maxval=bound)
        b = jax.random.uniform(kb, (fan_out,), dtype=dtype,
                               minval=-bound, maxval=bound)
        params.append((w_pt.T, b))
    return params


def resblock_reference(x, params, compute_dtype=jnp.bfloat16):
    """Plain-JAX reference with the same bf16-MXU / f32-accumulate math."""
    h = x.astype(jnp.float32)
    for (w, b) in params:
        acc = jnp.dot(h.astype(compute_dtype), w.astype(compute_dtype),
                      preferred_element_type=jnp.float32)
        h = jnp.maximum(acc + b.astype(jnp.float32), 0.0)
    return x.astype(jnp.float32) + h


if __name__ == "__main__":
    key = jax.random.PRNGKey(0)

    # Case 1: module-default small shapes (units=[32, 64, 32], batch=16).
    units1, batch1 = [32, 64, 32], 16
    key, kx1, kp1 = jax.random.split(key, 3)
    x1 = jax.random.normal(kx1, (batch1, units1[0]), dtype=jnp.float32)
    params1 = init_resblock_params(kp1, units1)
    prepared1 = prepare_resblock_params(params1)          # one-time prep
    ref1 = resblock_reference(x1, params1)

    # Exercise the fused Pallas kernel on the non-128-aligned small shape...
    y1 = jax.block_until_ready(
        resblock_forward(x1, prepared1, force_pallas=True))
    assert y1.shape == (batch1, units1[-1]), y1.shape
    assert jnp.allclose(y1, ref1.astype(y1.dtype), atol=2e-2, rtol=2e-2), (
        float(jnp.max(jnp.abs(y1 - ref1.astype(y1.dtype)))))

    # ...and the default heuristic path (tiny shapes -> plain XLA fallback).
    y1b = jax.block_until_ready(resblock_forward(x1, prepared1))
    assert jnp.allclose(y1b, ref1.astype(y1b.dtype), atol=2e-2, rtol=2e-2)

    # Case 2: lane-aligned shapes where the fused kernel runs by default.
    units2, batch2 = [128, 256, 128], 64
    key, kx2, kp2 = jax.random.split(key, 3)
    x2 = jax.random.normal(kx2, (batch2, units2[0]), dtype=jnp.float32)
    params2 = init_resblock_params(kp2, units2)
    prepared2 = prepare_resblock_params(params2)
    y2 = jax.block_until_ready(resblock_forward(x2, prepared2))
    ref2 = resblock_reference(x2, params2)
    assert y2.shape == (batch2, units2[-1]), y2.shape
    assert jnp.allclose(y2, ref2.astype(y2.dtype), atol=2e-2, rtol=2e-2), (
        float(jnp.max(jnp.abs(y2 - ref2.astype(y2.dtype)))))

    print("KERNEL_OK")
</pallas_src>

<mosaic_0001>
module attributes {stable_mosaic.version = 11 : i64} {
  func.func @_resblock_kernel(%arg0: i32, %arg1: memref<16x32xf32, #tpu.memory_space<vmem>>, %arg2: memref<32x128xbf16, #tpu.memory_space<vmem>>, %arg3: memref<1x128xf32, #tpu.memory_space<vmem>>, %arg4: memref<128x32xbf16, #tpu.memory_space<vmem>>, %arg5: memref<1x32xf32, #tpu.memory_space<vmem>>, %arg6: memref<16x32xf32, #tpu.memory_space<vmem>>) attributes {dimension_semantics = [#tpu.dimension_semantics<parallel>], iteration_bounds = array<i64: 1>, scalar_prefetch = 0 : i64, scratch_operands = 0 : i64, tpu.core_type = #tpu.core_type<tc>, window_params = [{transform_indices = @transform_0, window_bounds = array<i64: 16, 32>}, {pipeline_mode = #tpu.pipeline_mode<synchronous>, transform_indices = @transform_1, window_bounds = array<i64: 32, 128>}, {pipeline_mode = #tpu.pipeline_mode<synchronous>, transform_indices = @transform_2, window_bounds = array<i64: 1, 128>}, {pipeline_mode = #tpu.pipeline_mode<synchronous>, transform_indices = @transform_3, window_bounds = array<i64: 128, 32>}, {pipeline_mode = #tpu.pipeline_mode<synchronous>, transform_indices = @transform_4, window_bounds = array<i64: 1, 32>}, {transform_indices = @transform_5, window_bounds = array<i64: 16, 32>}]} {
    %c0 = arith.constant 0 : index
    %c0_0 = arith.constant 0 : index
    %0 = vector.load %arg1[%c0, %c0_0] : memref<16x32xf32, #tpu.memory_space<vmem>>, vector<16x32xf32>
    %c0_1 = arith.constant 0 : index
    %c0_2 = arith.constant 0 : index
    %1 = vector.load %arg2[%c0_1, %c0_2] : memref<32x128xbf16, #tpu.memory_space<vmem>>, vector<32x128xbf16>
    %c0_3 = arith.constant 0 : index
    %c0_4 = arith.constant 0 : index
    %2 = vector.load %arg3[%c0_3, %c0_4] : memref<1x128xf32, #tpu.memory_space<vmem>>, vector<1x128xf32>
    %3 = arith.truncf %0 : vector<16x32xf32> to vector<16x32xbf16>
    %cst = arith.constant dense<0.000000e+00> : vector<16x128xf32>
    %4 = tpu.matmul %3, %1, %cst {dimension_numbers = #tpu.dot_dimension_numbers<[1], [0], [0], [1], [0, 0, 1, 1], [], []>} : vector<16x32xbf16>, vector<32x128xbf16>, vector<16x128xf32> -> vector<16x128xf32>
    %5 = vector.broadcast %2 : vector<1x128xf32> to vector<16x128xf32>
    %6 = arith.addf %4, %5 : vector<16x128xf32>
    %cst_5 = arith.constant 0.000000e+00 : f32
    %7 = vector.broadcast %cst_5 : f32 to vector<16x128xf32>
    %8 = arith.maximumf %6, %7 : vector<16x128xf32>
    %c0_6 = arith.constant 0 : index
    %c0_7 = arith.constant 0 : index
    %9 = vector.load %arg4[%c0_6, %c0_7] : memref<128x32xbf16, #tpu.memory_space<vmem>>, vector<128x32xbf16>
    %c0_8 = arith.constant 0 : index
    %c0_9 = arith.constant 0 : index
    %10 = vector.load %arg5[%c0_8, %c0_9] : memref<1x32xf32, #tpu.memory_space<vmem>>, vector<1x32xf32>
    %11 = arith.truncf %8 : vector<16x128xf32> to vector<16x128xbf16>
    %cst_10 = arith.constant dense<0.000000e+00> : vector<16x32xf32>
    %12 = tpu.matmul %11, %9, %cst_10 {dimension_numbers = #tpu.dot_dimension_numbers<[1], [0], [0], [1], [0, 0, 1, 1], [], []>} : vector<16x128xbf16>, vector<128x32xbf16>, vector<16x32xf32> -> vector<16x32xf32>
    %13 = vector.broadcast %10 : vector<1x32xf32> to vector<16x32xf32>
    %14 = arith.addf %12, %13 : vector<16x32xf32>
    %cst_11 = arith.constant 0.000000e+00 : f32
    %15 = vector.broadcast %cst_11 : f32 to vector<16x32xf32>
    %16 = arith.maximumf %14, %15 : vector<16x32xf32>
    %17 = arith.addf %0, %16 : vector<16x32xf32>
    %c0_12 = arith.constant 0 : index
    %c0_13 = arith.constant 0 : index
    %18 = vector.load %arg6[%c0_12, %c0_13] : memref<16x32xf32, #tpu.memory_space<vmem>>, vector<16x32xf32>
    tpu.vector_store %arg6[%c0_12, %c0_13], %17 {strides = array<i32>} : memref<16x32xf32, #tpu.memory_space<vmem>>, vector<16x32xf32>,
    return
  }
  func.func @transform_0(%arg0: i32) -> (i32, i32) {
    %c0_i32 = arith.constant 0 : i32
    %c0_i32_0 = arith.constant 0 : i32
    return %arg0, %c0_i32 : i32, i32
  }
  func.func @transform_1(%arg0: i32) -> (i32, i32) {
    %c0_i32 = arith.constant 0 : i32
    %c0_i32_0 = arith.constant 0 : i32
    %c0_i32_1 = arith.constant 0 : i32
    return %c0_i32, %c0_i32_0 : i32, i32
  }
  func.func @transform_2(%arg0: i32) -> (i32, i32) {
    %c0_i32 = arith.constant 0 : i32
    %c0_i32_0 = arith.constant 0 : i32
    %c0_i32_1 = arith.constant 0 : i32
    return %c0_i32, %c0_i32_0 : i32, i32
  }
  func.func @transform_3(%arg0: i32) -> (i32, i32) {
    %c0_i32 = arith.constant 0 : i32
    %c0_i32_0 = arith.constant 0 : i32
    %c0_i32_1 = arith.constant 0 : i32
    return %c0_i32, %c0_i32_0 : i32, i32
  }
  func.func @transform_4(%arg0: i32) -> (i32, i32) {
    %c0_i32 = arith.constant 0 : i32
    %c0_i32_0 = arith.constant 0 : i32
    %c0_i32_1 = arith.constant 0 : i32
    return %c0_i32, %c0_i32_0 : i32, i32
  }
  func.func @transform_5(%arg0: i32) -> (i32, i32) {
    %c0_i32 = arith.constant 0 : i32
    %c0_i32_0 = arith.constant 0 : i32
    return %arg0, %c0_i32 : i32, i32
  }
}

module attributes {stable_mosaic.version = 11 : i64} {
  func.func @_resblock_kernel(%arg0: i32, %arg1: memref<16x32xf32, #tpu.memory_space<vmem>>, %arg2: memref<32x128xbf16, #tpu.memory_space<vmem>>, %arg3: memref<1x128xf32, #tpu.memory_space<vmem>>, %arg4: memref<128x32xbf16, #tpu.memory_space<vmem>>, %arg5: memref<1x32xf32, #tpu.memory_space<vmem>>, %arg6: memref<16x32xf32, #tpu.memory_space<vmem>>) attributes {dimension_semantics = [#tpu.dimension_semantics<parallel>], iteration_bounds = array<i64: 1>, scalar_prefetch = 0 : i64, scratch_operands = 0 : i64, tpu.core_type = #tpu.core_type<tc>, window_params = [{transform_indices = @transform_0, window_bounds = array<i64: 16, 32>}, {pipeline_mode = #tpu.pipeline_mode<synchronous>, transform_indices = @transform_1, window_bounds = array<i64: 32, 128>}, {pipeline_mode = #tpu.pipeline_mode<synchronous>, transform_indices = @transform_2, window_bounds = array<i64: 1, 128>}, {pipeline_mode = #tpu.pipeline_mode<synchronous>, transform_indices = @transform_3, window_bounds = array<i64: 128, 32>}, {pipeline_mode = #tpu.pipeline_mode<synchronous>, transform_indices = @transform_4, window_bounds = array<i64: 1, 32>}, {transform_indices = @transform_5, window_bounds = array<i64: 16, 32>}]} {
    %c0 = arith.constant 0 : index
    %c0_0 = arith.constant 0 : index
    %0 = vector.load %arg1[%c0, %c0_0] : memref<16x32xf32, #tpu.memory_space<vmem>>, vector<16x32xf32>
    %c0_1 = arith.constant 0 : index
    %c0_2 = arith.constant 0 : index
    %1 = vector.load %arg2[%c0_1, %c0_2] : memref<32x128xbf16, #tpu.memory_space<vmem>>, vector<32x128xbf16>
    %c0_3 = arith.constant 0 : index
    %c0_4 = arith.constant 0 : index
    %2 = vector.load %arg3[%c0_3, %c0_4] : memref<1x128xf32, #tpu.memory_space<vmem>>, vector<1x128xf32>
    %3 = arith.truncf %0 : vector<16x32xf32> to vector<16x32xbf16>
    %cst = arith.constant dense<0.000000e+00> : vector<16x128xf32>
    %4 = tpu.matmul %3, %1, %cst {dimension_numbers = #tpu.dot_dimension_numbers<[1], [0], [0], [1], [0, 0, 1, 1], [], []>} : vector<16x32xbf16>, vector<32x128xbf16>, vector<16x128xf32> -> vector<16x128xf32>
    %5 = vector.broadcast %2 : vector<1x128xf32> to vector<16x128xf32>
    %6 = arith.addf %4, %5 : vector<16x128xf32>
    %cst_5 = arith.constant 0.000000e+00 : f32
    %7 = vector.broadcast %cst_5 : f32 to vector<16x128xf32>
    %8 = arith.maximumf %6, %7 : vector<16x128xf32>
    %c0_6 = arith.constant 0 : index
    %c0_7 = arith.constant 0 : index
    %9 = vector.load %arg4[%c0_6, %c0_7] : memref<128x32xbf16, #tpu.memory_space<vmem>>, vector<128x32xbf16>
    %c0_8 = arith.constant 0 : index
    %c0_9 = arith.constant 0 : index
    %10 = vector.load %arg5[%c0_8, %c0_9] : memref<1x32xf32, #tpu.memory_space<vmem>>, vector<1x32xf32>
    %11 = arith.truncf %8 : vector<16x128xf32> to vector<16x128xbf16>
    %cst_10 = arith.constant dense<0.000000e+00> : vector<16x32xf32>
    %12 = tpu.matmul %11, %9, %cst_10 {dimension_numbers = #tpu.dot_dimension_numbers<[1], [0], [0], [1], [0, 0, 1, 1], [], []>} : vector<16x128xbf16>, vector<128x32xbf16>, vector<16x32xf32> -> vector<16x32xf32>
    %13 = vector.broadcast %10 : vector<1x32xf32> to vector<16x32xf32>
    %14 = arith.addf %12, %13 : vector<16x32xf32>
    %cst_11 = arith.constant 0.000000e+00 : f32
    %15 = vector.broadcast %cst_11 : f32 to vector<16x32xf32>
    %16 = arith.maximumf %14, %15 : vector<16x32xf32>
    %17 = arith.addf %0, %16 : vector<16x32xf32>
    %c0_12 = arith.constant 0 : index
    %c0_13 = arith.constant 0 : index
    %18 = vector.load %arg6[%c0_12, %c0_13] : memref<16x32xf32, #tpu.memory_space<vmem>>, vector<16x32xf32>
    tpu.vector_store %arg6[%c0_12, %c0_13], %17 {strides = array<i32>} : memref<16x32xf32, #tpu.memory_space<vmem>>, vector<16x32xf32>,
    return
  }
  func.func @transform_0(%arg0: i32) -> (i32, i32) {
    %c0_i32 = arith.constant 0 : i32
    %c0_i32_0 = arith.constant 0 : i32
    return %arg0, %c0_i32 : i32, i32
  }
  func.func @transform_1(%arg0: i32) -> (i32, i32) {
    %c0_i32 = arith.constant 0 : i32
    %c0_i32_0 = arith.constant 0 : i32
    %c0_i32_1 = arith.constant 0 : i32
    return %c0_i32, %c0_i32_0 : i32, i32
  }
  func.func @transform_2(%arg0: i32) -> (i32, i32) {
    %c0_i32 = arith.constant 0 : i32
    %c0_i32_0 = arith.constant 0 : i32
    %c0_i32_1 = arith.constant 0 : i32
    return %c0_i32, %c0_i32_0 : i32, i32
  }
  func.func @transform_3(%arg0: i32) -> (i32, i32) {
    %c0_i32 = arith.constant 0 : i32
    %c0_i32_0 = arith.constant 0 : i32
    %c0_i32_1 = arith.constant 0 : i32
    return %c0_i32, %c0_i32_0 : i32, i32
  }
  func.func @transform_4(%arg0: i32) -> (i32, i32) {
    %c0_i32 = arith.constant 0 : i32
    %c0_i32_0 = arith.constant 0 : i32
    %c0_i32_1 = arith.constant 0 : i32
    return %c0_i32, %c0_i32_0 : i32, i32
  }
  func.func @transform_5(%arg0: i32) -> (i32, i32) {
    %c0_i32 = arith.constant 0 : i32
    %c0_i32_0 = arith.constant 0 : i32
    return %arg0, %c0_i32 : i32, i32
  }
}

</mosaic_0001>

<llo_original>
// kernel: tpu_custom_call.1
$region0: #{tpu_custom_call.1}
  #allocation0 [shape = 'u32[]', space=smem, size = 0x4, offset = 0x4, fixed_abs, tag = 'smem constant byte address 0x4 - core index']
  #allocation1 [shape = 'u32[144,128]{1,0:T(1,128)}', space=vmem, size = 0x12000, scoped, tag = 'internal scratch']
  %s0 = inlined_call_operand.vmem [shape: f32[16,32], index: 0, kind: input, shape index: {}]
  %s1 = inlined_call_operand.vmem [shape: bf16[32,128], index: 1, kind: input, shape index: {}]
  %s2 = inlined_call_operand.vmem [shape: f32[1,128], index: 2, kind: input, shape index: {}]
  %s3 = inlined_call_operand.vmem [shape: bf16[128,32], index: 3, kind: input, shape index: {}]
  %s4 = inlined_call_operand.vmem [shape: f32[1,32], index: 4, kind: input, shape index: {}]
  %s5 = inlined_call_operand.hbm [shape: f32[16,32], index: 5, kind: output, shape index: {}]
  %s6 = sld [smem:[#allocation0]]
  $region30: #{tpu_custom_call.1} parent=0
    _
  %s8 = ssub.s32 1, %s6
  %s9 = scalar_select 0, %s8, %s6
  $region1: #{tpu_custom_call.1} parent=0
    #allocation2 [shape = 'u8[8192]{0}', space=vmem, size = 0x2000, scoped, tag = 'output window, operand 0, single buffered']
    #allocation3 [shape = 's32[1]{0}', space=sflag, size = 0x4, scoped, tag = 'scoped memory for tpu_custom_call.1']
    %10 = vsyncpa [#allocation3], 0
    // Predicated region
    $region2: #{tpu_custom_call.1} parent=1 // pred_check
      _
    $region3: #{tpu_custom_call.1} parent=1 // pred_check_branch
      %12 = sbr.rel (0) target = $region5
    $region4: #{tpu_custom_call.1} parent=1 // pred_region
      _
    $region5: #{tpu_custom_call.1} parent=1 // pred_fallthru
      _
    // Predicated region
    $region6: #{tpu_custom_call.1} parent=1 // pred_check
      _
    $region7: #{tpu_custom_call.1} parent=1 // pred_check_branch
      %14 = sbr.rel (0) target = $region9
    $region8: #{tpu_custom_call.1} parent=1 // pred_region
      _
    $region9: #{tpu_custom_call.1} parent=1 // pred_fallthru
      _
    // Predicated region
    $region10: #{tpu_custom_call.1} parent=1 // pred_check
      _
    $region11: #{tpu_custom_call.1} parent=1 // pred_check_branch
      %16 = sbr.rel (0) target = $region13
    $region12: #{tpu_custom_call.1} parent=1 // pred_region
      _
    $region13: #{tpu_custom_call.1} parent=1 // pred_fallthru
      _
    // Predicated region
    $region14: #{tpu_custom_call.1} parent=1 // pred_check
      _
    $region15: #{tpu_custom_call.1} parent=1 // pred_check_branch
      %18 = sbr.rel (0) target = $region17
    $region16: #{tpu_custom_call.1} parent=1 // pred_region
      _
    $region17: #{tpu_custom_call.1} parent=1 // pred_fallthru
      _
    // Predicated region
    $region18: #{tpu_custom_call.1} parent=1 // pred_check
      _
    $region19: #{tpu_custom_call.1} parent=1 // pred_check_branch
      %20 = sbr.rel (0) target = $region21
    $region20: #{tpu_custom_call.1} parent=1 // pred_region
      _
    $region21: #{tpu_custom_call.1} parent=1 // pred_fallthru
      _
    %v22 = vld [vmem:[%s0] sm:$0xff]
    %v23 = vld [vmem:[%s0 + $0x8] sm:$0xff]
    %v24 = vld [vmem:[%s1] sm:$0xf]
    %v25 = vld [vmem:[%s1 + $0x4] sm:$0xf]
    %v26 = vld [vmem:[%s1 + $0x8] sm:$0xf]
    %v27 = vld [vmem:[%s1 + $0xc] sm:$0xf]
    %v28 = vld [vmem:[%s2] sm:$0x1]
    %v29 = vpack.c.bf16 %v23, %v22
    %v31 = vlaneseq
    %v32 = vshrl.u32 %v31, 7
    %v33 = vsub.s32 0, %v32
    %v34 = vrot.slane %v28, %v33
    %v40 = vunpack.c.l.b16 %v24
    %v41 = vunpack.c.l.b16 %v25
    %v42 = vunpack.c.l.b16 %v26
    %v43 = vunpack.c.l.b16 %v27
    %v44 = vpack.c.b16 %v41, %v40
    %v45 = vpack.c.b16 %v43, %v42
    %vm48 = vcmask 261120
    %v50 = vsel %vm48, %v29, 0
    %52 = vmatprep.subr.bf16.mxu0 0
    %53 = vmatpush1.bf16.msra.mxu0 0
    %54 = vmatprep.subr.bf16.mxu0 0
    %55 = vmatpush1.bf16.msra.mxu0 0
    %56 = vmatprep.subr.bf16.mxu0 0
    %57 = vmatpush1.bf16.msra.mxu0 0
    %58 = vmatprep.subr.bf16.mxu0 0
    %59 = vmatpush1.bf16.msra.mxu0 0
    %60 = vmatprep.subr.bf16.mxu0 0
    %61 = vmatpush1.bf16.msra.mxu0 0
    %62 = vmatprep.subr.bf16.mxu0 0
    %63 = vmatpush1.bf16.msra.mxu0 0
    %64 = vmatprep.subr.bf16.mxu0 0
    %65 = vmatpush1.bf16.msra.mxu0 %v45
    %66 = vmatprep.subr.bf16.mxu0 0
    %67 = vmatpush1.bf16.msra.mxu0 %v44
    %68 = vmatprep.subr.bf16.mxu0 0
    %69 = vmatpush2.bf16.msra.mxu0 0
    %70 = vmatprep.subr.bf16.mxu0 0
    %71 = vmatpush2.bf16.msra.mxu0 0
    %72 = vmatprep.subr.bf16.mxu0 0
    %73 = vmatpush2.bf16.msra.mxu0 0
    %74 = vmatprep.subr.bf16.mxu0 0
    %75 = vmatpush2.bf16.msra.mxu0 0
    %76 = vmatprep.subr.bf16.mxu0 0
    %77 = vmatpush2.bf16.msra.mxu0 0
    %78 = vmatprep.subr.bf16.mxu0 0
    %79 = vmatpush2.bf16.msra.mxu0 0
    %80 = vmatprep.subr.bf16.mxu0 0
    %81 = vmatpush2.bf16.msra.mxu0 0
    %82 = vmatprep.subr.bf16.mxu0 0
    %83 = vmatpush2.bf16.msra.mxu0 0
    %84 = vmatprep.mubr.bf16.mxu0 0
    %85 = vmatmul.mubr.bf16.gmra.mxu0 %v50
    %v86 = vpop.f32.mrf.mxu0
    %v87 = vadd.f32 %v34, %v86
    %v88 = vpop.f32.mrf.mxu0
    %v89 = vpop.f32.mrf.mxu0
    %v90 = vadd.f32 %v34, %v89
    %v91 = vpop.f32.mrf.mxu0
    %92 = vdwg.mxu0
    %v93 = vmax.f32 %v87, 0.0
    %v94 = vmax.f32 %v90, 0.0
    %v95 = vld [vmem:[%s3] sm:$0xf]
    %v96 = vld [vmem:[%s3 + $0x4] sm:$0xf]
    %v97 = vld [vmem:[%s3 + $0x8] sm:$0xf]
    %v98 = vld [vmem:[%s3 + $0xc] sm:$0xf]
    %v99 = vld [vmem:[%s3 + $0x10] sm:$0xf]
    %v100 = vld [vmem:[%s3 + $0x14] sm:$0xf]
    %v101 = vld [vmem:[%s3 + $0x18] sm:$0xf]
    %v102 = vld [vmem:[%s3 + $0x1c] sm:$0xf]
    %v103 = vld [vmem:[%s3 + $0x20] sm:$0xf]
    %v104 = vld [vmem:[%s3 + $0x24] sm:$0xf]
    %v105 = vld [vmem:[%s3 + $0x28] sm:$0xf]
    %v106 = vld [vmem:[%s3 + $0x2c] sm:$0xf]
    %v107 = vld [vmem:[%s3 + $0x30] sm:$0xf]
    %v108 = vld [vmem:[%s3 + $0x34] sm:$0xf]
    %v109 = vld [vmem:[%s3 + $0x38] sm:$0xf]
    %v110 = vld [vmem:[%s3 + $0x3c] sm:$0xf]
    %v111 = vld [vmem:[%s4] sm:$0x1]
    %v112 = vpack.c.bf16 %v94, %v93
    %v114 = vlaneseq
    %v115 = vshrl.u32 %v114, 7
    %v116 = vsub.s32 0, %v115
    %v117 = vrot.slane %v111, %v116
    %v135 = vunpack.c.l.b16 %v95
    %v136 = vunpack.c.l.b16 %v96
    %v137 = vunpack.c.l.b16 %v97
    %v138 = vunpack.c.l.b16 %v98
    %v139 = vunpack.c.l.b16 %v99
    %v140 = vunpack.c.l.b16 %v100
    %v141 = vunpack.c.l.b16 %v101
    %v142 = vunpack.c.l.b16 %v102
    %v143 = vunpack.c.l.b16 %v103
    %v144 = vunpack.c.l.b16 %v104
    %v145 = vunpack.c.l.b16 %v105
    %v146 = vunpack.c.l.b16 %v106
    %v147 = vunpack.c.l.b16 %v107
    %v148 = vunpack.c.l.b16 %v108
    %v149 = vunpack.c.l.b16 %v109
    %v150 = vunpack.c.l.b16 %v110
    %v151 = vpack.c.b16 %v136, %v135
    %v152 = vpack.c.b16 %v138, %v137
    %v153 = vpack.c.b16 %v140, %v139
    %v154 = vpack.c.b16 %v142, %v141
    %v155 = vpack.c.b16 %v144, %v143
    %v156 = vpack.c.b16 %v146, %v145
    %v157 = vpack.c.b16 %v148, %v147
    %v158 = vpack.c.b16 %v150, %v149
    %167 = vmatprep.subr.bf16.mxu0 0
    %168 = vmatpush1.bf16.msra.mxu0 %v158
    %169 = vmatprep.subr.bf16.mxu0 0
    %170 = vmatpush1.bf16.msra.mxu0 %v157
    %171 = vmatprep.subr.bf16.mxu0 0
    %172 = vmatpush1.bf16.msra.mxu0 %v156
    %173 = vmatprep.subr.bf16.mxu0 0
    %174 = vmatpush1.bf16.msra.mxu0 %v155
    %175 = vmatprep.subr.bf16.mxu0 0
    %176 = vmatpush1.bf16.msra.mxu0 %v154
    %177 = vmatprep.subr.bf16.mxu0 0
    %178 = vmatpush1.bf16.msra.mxu0 %v153
    %179 = vmatprep.subr.bf16.mxu0 0
    %180 = vmatpush1.bf16.msra.mxu0 %v152
    %181 = vmatprep.subr.bf16.mxu0 0
    %182 = vmatpush1.bf16.msra.mxu0 %v151
    %183 = vmatprep.subr.bf16.mxu0 0
    %184 = vmatpush2.bf16.msra.mxu0 0
    %185 = vmatprep.subr.bf16.mxu0 0
    %186 = vmatpush2.bf16.msra.mxu0 0
    %187 = vmatprep.subr.bf16.mxu0 0
    %188 = vmatpush2.bf16.msra.mxu0 0
    %189 = vmatprep.subr.bf16.mxu0 0
    %190 = vmatpush2.bf16.msra.mxu0 0
    %191 = vmatprep.subr.bf16.mxu0 0
    %192 = vmatpush2.bf16.msra.mxu0 0
    %193 = vmatprep.subr.bf16.mxu0 0
    %194 = vmatpush2.bf16.msra.mxu0 0
    %195 = vmatprep.subr.bf16.mxu0 0
    %196 = vmatpush2.bf16.msra.mxu0 0
    %197 = vmatprep.subr.bf16.mxu0 0
    %198 = vmatpush2.bf16.msra.mxu0 0
    %199 = vmatprep.mubr.bf16.mxu0 0
    %200 = vmatmul.mubr.bf16.gmra.mxu0 %v112
    %v201 = vpop.f32.mrf.mxu0
    %v202 = vadd.f32 %v117, %v201
    %v203 = vpop.f32.mrf.mxu0
    %v204 = vpop.f32.mrf.mxu0
    %v205 = vadd.f32 %v117, %v204
    %v206 = vpop.f32.mrf.mxu0
    %207 = vdwg.mxu0
    %v208 = vmax.f32 %v202, 0.0
    %v209 = vmax.f32 %v205, 0.0
    %v210 = vadd.f32 %v22, %v208
    %v211 = vadd.f32 %v23, %v209
    %212 = vst.msk [vmem:[#allocation2] sm:$0xff] %vm48, %v210
    %213 = vst.msk [vmem:[#allocation2 + $0x8] sm:$0xff] %vm48, %v211
    // Predicated region
    $region22: #{tpu_custom_call.1} parent=1 // pred_check
      _
    $region23: #{tpu_custom_call.1} parent=1 // pred_check_branch
      %215 = sbr.rel (0) target = $region25
    $region24: #{tpu_custom_call.1} parent=1 // pred_region
      %s217 = ssub.s32 256, 256
      %218 = vsyncadd [#allocation3], %s217
      %s219 = sshll.u32 [#allocation2], 4
      %s220 = int_to_ptr.vmem [resolvable:$true] %s219
      %225 = dma.vmem_to_hbm [thread:$0]  %s220, 256, %s5, [#allocation3], 128, 128, 8
    $region25: #{tpu_custom_call.1} parent=1 // pred_fallthru
      _
    // Predicated region
    $region26: #{tpu_custom_call.1} parent=1 // pred_check
      _
    $region27: #{tpu_custom_call.1} parent=1 // pred_check_branch
      %227 = sbr.rel (0) target = $region29
    $region28: #{tpu_custom_call.1} parent=1 // pred_region
      %228 = dma.done [#allocation3], 256
    $region29: #{tpu_custom_call.1} parent=1 // pred_fallthru
      _
    %229 = vsyncpa [#allocation3], 1

// kernel: tpu_custom_call.1
$region0: #{tpu_custom_call.1}
  #allocation0 [shape = 'u32[]', space=smem, size = 0x4, offset = 0x4, fixed_abs, tag = 'smem constant byte address 0x4 - core index']
  #allocation1 [shape = 'u32[144,128]{1,0:T(1,128)}', space=vmem, size = 0x12000, scoped, tag = 'internal scratch']
  %s0 = inlined_call_operand.vmem [shape: f32[16,32], index: 0, kind: input, shape index: {}]
  %s1 = inlined_call_operand.vmem [shape: bf16[32,128], index: 1, kind: input, shape index: {}]
  %s2 = inlined_call_operand.vmem [shape: f32[1,128], index: 2, kind: input, shape index: {}]
  %s3 = inlined_call_operand.vmem [shape: bf16[128,32], index: 3, kind: input, shape index: {}]
  %s4 = inlined_call_operand.vmem [shape: f32[1,32], index: 4, kind: input, shape index: {}]
  %s5 = inlined_call_operand.hbm [shape: f32[16,32], index: 5, kind: output, shape index: {}]
  %s6 = sld [smem:[#allocation0]]
  $region30: #{tpu_custom_call.1} parent=0
    _
  %s8 = ssub.s32 1, %s6
  %s9 = scalar_select 0, %s8, %s6
  $region1: #{tpu_custom_call.1} parent=0
    #allocation2 [shape = 'u8[8192]{0}', space=vmem, size = 0x2000, scoped, tag = 'output window, operand 0, single buffered']
    #allocation3 [shape = 's32[1]{0}', space=sflag, size = 0x4, scoped, tag = 'scoped memory for tpu_custom_call.1']
    %10 = vsyncpa [#allocation3], 0
    // Predicated region
    $region2: #{tpu_custom_call.1} parent=1 // pred_check
      _
    $region3: #{tpu_custom_call.1} parent=1 // pred_check_branch
      %12 = sbr.rel (0) target = $region5
    $region4: #{tpu_custom_call.1} parent=1 // pred_region
      _
    $region5: #{tpu_custom_call.1} parent=1 // pred_fallthru
      _
    // Predicated region
    $region6: #{tpu_custom_call.1} parent=1 // pred_check
      _
    $region7: #{tpu_custom_call.1} parent=1 // pred_check_branch
      %14 = sbr.rel (0) target = $region9
    $region8: #{tpu_custom_call.1} parent=1 // pred_region
      _
    $region9: #{tpu_custom_call.1} parent=1 // pred_fallthru
      _
    // Predicated region
    $region10: #{tpu_custom_call.1} parent=1 // pred_check
      _
    $region11: #{tpu_custom_call.1} parent=1 // pred_check_branch
      %16 = sbr.rel (0) target = $region13
    $region12: #{tpu_custom_call.1} parent=1 // pred_region
      _
    $region13: #{tpu_custom_call.1} parent=1 // pred_fallthru
      _
    // Predicated region
    $region14: #{tpu_custom_call.1} parent=1 // pred_check
      _
    $region15: #{tpu_custom_call.1} parent=1 // pred_check_branch
      %18 = sbr.rel (0) target = $region17
    $region16: #{tpu_custom_call.1} parent=1 // pred_region
      _
    $region17: #{tpu_custom_call.1} parent=1 // pred_fallthru
      _
    // Predicated region
    $region18: #{tpu_custom_call.1} parent=1 // pred_check
      _
    $region19: #{tpu_custom_call.1} parent=1 // pred_check_branch
      %20 = sbr.rel (0) target = $region21
    $region20: #{tpu_custom_call.1} parent=1 // pred_region
      _
    $region21: #{tpu_custom_call.1} parent=1 // pred_fallthru
      _
    %v22 = vld [vmem:[%s0] sm:$0xff]
    %v23 = vld [vmem:[%s0 + $0x8] sm:$0xff]
    %v24 = vld [vmem:[%s1] sm:$0xf]
    %v25 = vld [vmem:[%s1 + $0x4] sm:$0xf]
    %v26 = vld [vmem:[%s1 + $0x8] sm:$0xf]
    %v27 = vld [vmem:[%s1 + $0xc] sm:$0xf]
    %v28 = vld [vmem:[%s2] sm:$0x1]
    %v29 = vpack.c.bf16 %v23, %v22
    %v31 = vlaneseq
    %v32 = vshrl.u32 %v31, 7
    %v33 = vsub.s32 0, %v32
    %v34 = vrot.slane %v28, %v33
    %v40 = vunpack.c.l.b16 %v24
    %v41 = vunpack.c.l.b16 %v25
    %v42 = vunpack.c.l.b16 %v26
    %v43 = vunpack.c.l.b16 %v27
    %v44 = vpack.c.b16 %v41, %v40
    %v45 = vpack.c.b16 %v43, %v42
    %vm48 = vcmask 261120
    %v50 = vsel %vm48, %v29, 0
    %52 = vmatprep.subr.bf16.mxu0 0
    %53 = vmatpush1.bf16.msra.mxu0 0
    %54 = vmatprep.subr.bf16.mxu0 0
    %55 = vmatpush1.bf16.msra.mxu0 0
    %56 = vmatprep.subr.bf16.mxu0 0
    %57 = vmatpush1.bf16.msra.mxu0 0
    %58 = vmatprep.subr.bf16.mxu0 0
    %59 = vmatpush1.bf16.msra.mxu0 0
    %60 = vmatprep.subr.bf16.mxu0 0
    %61 = vmatpush1.bf16.msra.mxu0 0
    %62 = vmatprep.subr.bf16.mxu0 0
    %63 = vmatpush1.bf16.msra.mxu0 0
    %64 = vmatprep.subr.bf16.mxu0 0
    %65 = vmatpush1.bf16.msra.mxu0 %v45
    %66 = vmatprep.subr.bf16.mxu0 0
    %67 = vmatpush1.bf16.msra.mxu0 %v44
    %68 = vmatprep.subr.bf16.mxu0 0
    %69 = vmatpush2.bf16.msra.mxu0 0
    %70 = vmatprep.subr.bf16.mxu0 0
    %71 = vmatpush2.bf16.msra.mxu0 0
    %72 = vmatprep.subr.bf16.mxu0 0
    %73 = vmatpush2.bf16.msra.mxu0 0
    %74 = vmatprep.subr.bf16.mxu0 0
    %75 = vmatpush2.bf16.msra.mxu0 0
    %76 = vmatprep.subr.bf16.mxu0 0
    %77 = vmatpush2.bf16.msra.mxu0 0
    %78 = vmatprep.subr.bf16.mxu0 0
    %79 = vmatpush2.bf16.msra.mxu0 0
    %80 = vmatprep.subr.bf16.mxu0 0
    %81 = vmatpush2.bf16.msra.mxu0 0
    %82 = vmatprep.subr.bf16.mxu0 0
    %83 = vmatpush2.bf16.msra.mxu0 0
    %84 = vmatprep.mubr.bf16.mxu0 0
    %85 = vmatmul.mubr.bf16.gmra.mxu0 %v50
    %v86 = vpop.f32.mrf.mxu0
    %v87 = vadd.f32 %v34, %v86
    %v88 = vpop.f32.mrf.mxu0
    %v89 = vpop.f32.mrf.mxu0
    %v90 = vadd.f32 %v34, %v89
    %v91 = vpop.f32.mrf.mxu0
    %92 = vdwg.mxu0
    %v93 = vmax.f32 %v87, 0.0
    %v94 = vmax.f32 %v90, 0.0
    %v95 = vld [vmem:[%s3] sm:$0xf]
    %v96 = vld [vmem:[%s3 + $0x4] sm:$0xf]
    %v97 = vld [vmem:[%s3 + $0x8] sm:$0xf]
    %v98 = vld [vmem:[%s3 + $0xc] sm:$0xf]
    %v99 = vld [vmem:[%s3 + $0x10] sm:$0xf]
    %v100 = vld [vmem:[%s3 + $0x14] sm:$0xf]
    %v101 = vld [vmem:[%s3 + $0x18] sm:$0xf]
    %v102 = vld [vmem:[%s3 + $0x1c] sm:$0xf]
    %v103 = vld [vmem:[%s3 + $0x20] sm:$0xf]
    %v104 = vld [vmem:[%s3 + $0x24] sm:$0xf]
    %v105 = vld [vmem:[%s3 + $0x28] sm:$0xf]
    %v106 = vld [vmem:[%s3 + $0x2c] sm:$0xf]
    %v107 = vld [vmem:[%s3 + $0x30] sm:$0xf]
    %v108 = vld [vmem:[%s3 + $0x34] sm:$0xf]
    %v109 = vld [vmem:[%s3 + $0x38] sm:$0xf]
    %v110 = vld [vmem:[%s3 + $0x3c] sm:$0xf]
    %v111 = vld [vmem:[%s4] sm:$0x1]
    %v112 = vpack.c.bf16 %v94, %v93
    %v114 = vlaneseq
    %v115 = vshrl.u32 %v114, 7
    %v116 = vsub.s32 0, %v115
    %v117 = vrot.slane %v111, %v116
    %v135 = vunpack.c.l.b16 %v95
    %v136 = vunpack.c.l.b16 %v96
    %v137 = vunpack.c.l.b16 %v97
    %v138 = vunpack.c.l.b16 %v98
    %v139 = vunpack.c.l.b16 %v99
    %v140 = vunpack.c.l.b16 %v100
    %v141 = vunpack.c.l.b16 %v101
    %v142 = vunpack.c.l.b16 %v102
    %v143 = vunpack.c.l.b16 %v103
    %v144 = vunpack.c.l.b16 %v104
    %v145 = vunpack.c.l.b16 %v105
    %v146 = vunpack.c.l.b16 %v106
    %v147 = vunpack.c.l.b16 %v107
    %v148 = vunpack.c.l.b16 %v108
    %v149 = vunpack.c.l.b16 %v109
    %v150 = vunpack.c.l.b16 %v110
    %v151 = vpack.c.b16 %v136, %v135
    %v152 = vpack.c.b16 %v138, %v137
    %v153 = vpack.c.b16 %v140, %v139
    %v154 = vpack.c.b16 %v142, %v141
    %v155 = vpack.c.b16 %v144, %v143
    %v156 = vpack.c.b16 %v146, %v145
    %v157 = vpack.c.b16 %v148, %v147
    %v158 = vpack.c.b16 %v150, %v149
    %167 = vmatprep.subr.bf16.mxu0 0
    %168 = vmatpush1.bf16.msra.mxu0 %v158
    %169 = vmatprep.subr.bf16.mxu0 0
    %170 = vmatpush1.bf16.msra.mxu0 %v157
    %171 = vmatprep.subr.bf16.mxu0 0
    %172 = vmatpush1.bf16.msra.mxu0 %v156
    %173 = vmatprep.subr.bf16.mxu0 0
    %174 = vmatpush1.bf16.msra.mxu0 %v155
    %175 = vmatprep.subr.bf16.mxu0 0
    %176 = vmatpush1.bf16.msra.mxu0 %v154
    %177 = vmatprep.subr.bf16.mxu0 0
    %178 = vmatpush1.bf16.msra.mxu0 %v153
    %179 = vmatprep.subr.bf16.mxu0 0
    %180 = vmatpush1.bf16.msra.mxu0 %v152
    %181 = vmatprep.subr.bf16.mxu0 0
    %182 = vmatpush1.bf16.msra.mxu0 %v151
    %183 = vmatprep.subr.bf16.mxu0 0
    %184 = vmatpush2.bf16.msra.mxu0 0
    %185 = vmatprep.subr.bf16.mxu0 0
    %186 = vmatpush2.bf16.msra.mxu0 0
    %187 = vmatprep.subr.bf16.mxu0 0
    %188 = vmatpush2.bf16.msra.mxu0 0
    %189 = vmatprep.subr.bf16.mxu0 0
    %190 = vmatpush2.bf16.msra.mxu0 0
    %191 = vmatprep.subr.bf16.mxu0 0
    %192 = vmatpush2.bf16.msra.mxu0 0
    %193 = vmatprep.subr.bf16.mxu0 0
    %194 = vmatpush2.bf16.msra.mxu0 0
    %195 = vmatprep.subr.bf16.mxu0 0
    %196 = vmatpush2.bf16.msra.mxu0 0
    %197 = vmatprep.subr.bf16.mxu0 0
    %198 = vmatpush2.bf16.msra.mxu0 0
    %199 = vmatprep.mubr.bf16.mxu0 0
    %200 = vmatmul.mubr.bf16.gmra.mxu0 %v112
    %v201 = vpop.f32.mrf.mxu0
    %v202 = vadd.f32 %v117, %v201
    %v203 = vpop.f32.mrf.mxu0
    %v204 = vpop.f32.mrf.mxu0
    %v205 = vadd.f32 %v117, %v204
    %v206 = vpop.f32.mrf.mxu0
    %207 = vdwg.mxu0
    %v208 = vmax.f32 %v202, 0.0
    %v209 = vmax.f32 %v205, 0.0
    %v210 = vadd.f32 %v22, %v208
    %v211 = vadd.f32 %v23, %v209
    %212 = vst.msk [vmem:[#allocation2] sm:$0xff] %vm48, %v210
    %213 = vst.msk [vmem:[#allocation2 + $0x8] sm:$0xff] %vm48, %v211
    // Predicated region
    $region22: #{tpu_custom_call.1} parent=1 // pred_check
      _
    $region23: #{tpu_custom_call.1} parent=1 // pred_check_branch
      %215 = sbr.rel (0) target = $region25
    $region24: #{tpu_custom_call.1} parent=1 // pred_region
      %s217 = ssub.s32 256, 256
      %218 = vsyncadd [#allocation3], %s217
      %s219 = sshll.u32 [#allocation2], 4
      %s220 = int_to_ptr.vmem [resolvable:$true] %s219
      %225 = dma.vmem_to_hbm [thread:$0]  %s220, 256, %s5, [#allocation3], 128, 128, 8
    $region25: #{tpu_custom_call.1} parent=1 // pred_fallthru
      _
    // Predicated region
    $region26: #{tpu_custom_call.1} parent=1 // pred_check
      _
    $region27: #{tpu_custom_call.1} parent=1 // pred_check_branch
      %227 = sbr.rel (0) target = $region29
    $region28: #{tpu_custom_call.1} parent=1 // pred_region
      %228 = dma.done [#allocation3], 256
    $region29: #{tpu_custom_call.1} parent=1 // pred_fallthru
      _
    %229 = vsyncpa [#allocation3], 1

</llo_original>
